<compile_context>
chip_gen: v6e
topology: v6e:2x2x1
jax: 0.10.0
libtpu: 0.0.40
codegen_flags: <defaults>
</compile_context>

<pallas_src>
import functools

import jax
import jax.numpy as jnp
from jax.experimental import pallas as pl
from jax.experimental.pallas import tpu as pltpu


LANE = 128
EPS = 1e-5
VMEM_LIMIT = 40 * 1024 * 1024          # below v7x's 64 MiB physical ceiling, with headroom
FUSED_VMEM_BUDGET = 20 * 1024 * 1024   # fused path only when its VMEM estimate fits comfortably


def _round_up(x, m):
    return ((x + m - 1) // m) * m


def _pad2d(x, rows, cols):
    return jnp.pad(x, ((0, rows - x.shape[0]), (0, cols - x.shape[1])))


def _largest_divisor_tile(extent, candidates):
    for c in candidates:
        if extent % c == 0:
            return c
    return extent


# ----------------------------- fused single-call kernel (small graphs) -----------------------------

def fused_kernel(x_ref, a_ref, w_ref, p_ref, o_ref, *, n_valid, dp):
    # ZCAT = X @ [W | Wd]   (one MXU matmul), split into Z / RES by lane-aligned slices.
    zcat = jnp.dot(x_ref[...], w_ref[...], preferred_element_type=jnp.float32)
    z = zcat[:, :dp].astype(a_ref.dtype)       # feed the second MXU matmul in the MXU dtype
    res = zcat[:, dp:]                          # residual term (f32)

    # H = A_hat @ Z   (padded rows/cols of A_hat are zero -> padded rows of H are exactly 0)
    h = jnp.dot(a_ref[...], z, preferred_element_type=jnp.float32)

    # BatchNorm1d training-mode batch statistics over the valid N rows.
    # Padded rows of H are zero so the plain column sum is already the valid-row sum; the
    # centered second pass is masked so padded rows contribute 0 (exact two-pass stats).
    inv_n = jnp.float32(1.0 / n_valid)
    mean = jnp.sum(h, axis=0, keepdims=True) * inv_n
    rows = jax.lax.broadcasted_iota(jnp.int32, h.shape, 0)
    centered = jnp.where(rows < n_valid, h - mean, 0.0)
    var = jnp.sum(centered * centered, axis=0, keepdims=True) * inv_n

    gamma = p_ref[0:1, :]
    beta = p_ref[1:2, :]
    bd = p_ref[2:3, :]
    scale = gamma * jax.lax.rsqrt(var + EPS)
    shift = beta - mean * scale

    o_ref[...] = (jnp.maximum(h * scale + shift, 0.0) + res + bd).astype(o_ref.dtype)


# ----------------------------- multi-tile kernels (large graphs) -----------------------------

def xw_kernel(x_ref, w_ref, bd_ref, z_ref, res_ref, *, dp):
    # One fused MXU matmul, two contiguous lane-dense outputs.  bd folded into RES here.
    zcat = jnp.dot(x_ref[...], w_ref[...], preferred_element_type=jnp.float32)
    z_ref[...] = zcat[:, :dp].astype(z_ref.dtype)
    res_ref[...] = (zcat[:, dp:] + bd_ref[...]).astype(res_ref.dtype)


def agg_kernel(a_ref, z_ref, h_ref, stats_ref):
    # H row tile accumulated directly into the resident f32 output block across the k axis.
    k = pl.program_id(1)

    @pl.when(k == 0)
    def _():
        h_ref[...] = jnp.zeros_like(h_ref)

    h_ref[...] += jnp.dot(a_ref[...], z_ref[...], preferred_element_type=jnp.float32)

    # BN partial statistics emitted once per row tile (XLU/VPU work, free next to the MXU).
    @pl.when(k == pl.num_programs(1) - 1)
    def _():
        h = h_ref[...]
        colsum = jnp.sum(h, axis=0, keepdims=True)
        colsq = jnp.sum(h * h, axis=0, keepdims=True)
        pad = jnp.zeros((stats_ref.shape[0] - 2, colsum.shape[1]), jnp.float32)
        stats_ref[...] = jnp.concatenate([colsum, colsq, pad], axis=0)


def bn_res_kernel(h_ref, res_ref, p_ref, o_ref):
    # out = relu(h * scale + shift) + res   (FMA-shaped BN, f32 VPU math, lane-dense)
    scale = p_ref[0:1, :]
    shift = p_ref[1:2, :]
    h = h_ref[...]
    res = res_ref[...].astype(jnp.float32)
    o_ref[...] = (jnp.maximum(h * scale + shift, 0.0) + res).astype(o_ref.dtype)


# ----------------------------- wrapper -----------------------------

def gnn_block_forward(x, a_hat, w, b, wd, bd, gamma, beta, *,
                      compute_dtype=jnp.float32, force_multi_tile=False):
    """GNNBlock forward (GCN conv + BN(train) + ReLU + residual Linear downsampling).

    `b` (GCN conv bias) is accepted for interface parity but is exactly cancelled by
    training-mode BatchNorm mean subtraction, so it is never DMA'd into any kernel.
    Zero padding of nodes / features keeps all math exact (padded columns stay 0 and are
    sliced away; BN statistics are computed only over the valid N rows).
    """
    del b  # exactly cancelled by BN batch-statistics mean subtraction

    n, din = x.shape
    dout = w.shape[1]

    dp = _round_up(dout, LANE)                   # lane-dense feature width
    din_p = _round_up(din, LANE)
    np_ = _round_up(n, LANE)                     # pad nodes only to 128 (no 512 up-rounding blowup)
    itemsize = jnp.dtype(compute_dtype).itemsize

    # ---- pad + pack operands ----
    x_p = _pad2d(x, np_, din_p).astype(compute_dtype)
    a_p = _pad2d(a_hat, np_, np_).astype(compute_dtype)
    w_cat = jnp.concatenate([_pad2d(w, din_p, dp), _pad2d(wd, din_p, dp)],
                            axis=1).astype(compute_dtype)            # [din_p, 2*dp]
    gamma_p = jnp.pad(gamma.reshape(-1).astype(jnp.float32), (0, dp - dout))
    beta_p = jnp.pad(beta.reshape(-1).astype(jnp.float32), (0, dp - dout))
    bd_p = jnp.pad(bd.reshape(-1).astype(jnp.float32), (0, dp - dout))

    # ---------------- fused fast path (whole padded problem fits one VMEM tile) ----------------
    fused_bytes = ((np_ * np_ + np_ * din_p + din_p * 2 * dp) * itemsize
                   + 7 * np_ * dp * 4)
    if (not force_multi_tile) and fused_bytes <= FUSED_VMEM_BUDGET:
        params = jnp.stack([gamma_p, beta_p, bd_p], axis=0)          # [3, dp]
        out_p = pl.pallas_call(
            functools.partial(fused_kernel, n_valid=n, dp=dp),
            out_shape=jax.ShapeDtypeStruct((np_, dp), jnp.float32),
            compiler_params=pltpu.CompilerParams(vmem_limit_bytes=VMEM_LIMIT),
        )(x_p, a_p, w_cat, params)
        return out_p[:n, :dout].astype(x.dtype)

    # ---------------- multi-tile path ----------------
    # Asymmetric stage-2 tiles: A_hat is read once, Z is re-read once per row tile, so make
    # the row tile as large as practical.  np_ is a multiple of 128 so 128 always divides.
    t_k = _largest_divisor_tile(np_, (512, 256, 128))
    t_row = _largest_divisor_tile(np_, (2048, 1024, 512, 256, 128))
    while np_ // t_row < 2 and t_row > t_k:      # v7x megacore: keep >= 2 parallel row tiles
        t_row //= 2
    r = np_ // t_row                             # row tiles  ("parallel")
    kt = np_ // t_k                              # k tiles    ("arbitrary" reduction)

    # ---- stage 1: Z = X @ W, RES = X @ Wd + bd  (two contiguous lane-dense outputs) ----
    z, res = pl.pallas_call(
        functools.partial(xw_kernel, dp=dp),
        grid=(r,),
        in_specs=[
            pl.BlockSpec((t_row, din_p), lambda i: (i, 0)),
            pl.BlockSpec((din_p, 2 * dp), lambda i: (0, 0)),
            pl.BlockSpec((1, dp), lambda i: (0, 0)),
        ],
        out_specs=[
            pl.BlockSpec((t_row, dp), lambda i: (i, 0)),
            pl.BlockSpec((t_row, dp), lambda i: (i, 0)),
        ],
        out_shape=[
            jax.ShapeDtypeStruct((np_, dp), compute_dtype),   # Z feeds the next MXU matmul
            jax.ShapeDtypeStruct((np_, dp), jnp.float32),     # RES stays f32 for the final add
        ],
        compiler_params=pltpu.CompilerParams(
            dimension_semantics=("parallel",),
            vmem_limit_bytes=VMEM_LIMIT),
    )(x_p, w_cat, bd_p.reshape(1, dp))

    # ---- stage 2: H = A_hat @ Z  (direct f32 output accumulation + BN partial stats) ----
    stats_rows = 8                               # sublane-padded stats slab per row tile
    h, stats = pl.pallas_call(
        agg_kernel,
        grid=(r, kt),
        in_specs=[
            pl.BlockSpec((t_row, t_k), lambda i, k: (i, k)),   # A_hat tile
            pl.BlockSpec((t_k, dp), lambda i, k: (k, 0)),      # Z tile
        ],
        out_specs=[
            pl.BlockSpec((t_row, dp), lambda i, k: (i, 0)),          # H (resident accumulator)
            pl.BlockSpec((stats_rows, dp), lambda i, k: (i, 0)),     # [colsum; colsumsq; 0...]
        ],
        out_shape=[
            jax.ShapeDtypeStruct((np_, dp), jnp.float32),
            jax.ShapeDtypeStruct((r * stats_rows, dp), jnp.float32),
        ],
        cost_estimate=pl.CostEstimate(
            flops=2 * np_ * np_ * dp,
            transcendentals=0,
            bytes_accessed=(np_ * np_ * itemsize            # A_hat read once
                            + r * np_ * dp * itemsize       # Z re-read once per row tile
                            + np_ * dp * 4                  # H written
                            + r * stats_rows * dp * 4)),    # stats written
        compiler_params=pltpu.CompilerParams(
            dimension_semantics=("parallel", "arbitrary"),
            vmem_limit_bytes=VMEM_LIMIT),
    )(a_p, z)

    # ---- BN finalize (tiny JAX): fold stats into per-column scale / shift ----
    stats = stats.reshape(r, stats_rows, dp)
    sums = jnp.sum(stats[:, 0, :], axis=0)
    sumsqs = jnp.sum(stats[:, 1, :], axis=0)
    mean = sums / n                                          # padded rows contributed 0
    var = jnp.maximum(sumsqs / n - mean * mean, 0.0)         # one-pass var, f32 accumulation
    scale = gamma_p * jax.lax.rsqrt(var + EPS)
    shift = beta_p - mean * scale
    params = jnp.stack([scale, shift], axis=0)               # packed [2, dp]

    # ---- stage 3: out = relu(H*scale + shift) + RES ----
    out_p = pl.pallas_call(
        bn_res_kernel,
        grid=(r,),
        in_specs=[
            pl.BlockSpec((t_row, dp), lambda i: (i, 0)),
            pl.BlockSpec((t_row, dp), lambda i: (i, 0)),
            pl.BlockSpec((2, dp), lambda i: (0, 0)),
        ],
        out_specs=pl.BlockSpec((t_row, dp), lambda i: (i, 0)),
        out_shape=jax.ShapeDtypeStruct((np_, dp), jnp.float32),
        compiler_params=pltpu.CompilerParams(
            dimension_semantics=("parallel",),
            vmem_limit_bytes=VMEM_LIMIT),
    )(h, res, params)

    return out_p[:n, :dout].astype(x.dtype)


# ----------------------------- plain-JAX glue / reference -----------------------------

def build_normalized_adjacency(edge_index, num_nodes):
    """Dense GCN-normalized adjacency with self loops."""
    src, dst = edge_index[0], edge_index[1]
    adj = jnp.zeros((num_nodes, num_nodes), jnp.float32)
    adj = adj.at[dst, src].set(1.0)                 # messages flow src -> dst
    adj = adj + jnp.eye(num_nodes, dtype=jnp.float32)
    deg = jnp.sum(adj, axis=1)
    d_inv_sqrt = 1.0 / jnp.sqrt(jnp.maximum(deg, 1.0))
    return d_inv_sqrt[:, None] * adj * d_inv_sqrt[None, :]


def make_graph(key, num_nodes, num_extra_edges):
    ring_src = jnp.arange(num_nodes, dtype=jnp.int32)
    ring_dst = (ring_src + 1) % num_nodes
    extra_src = jax.random.randint(key, (num_extra_edges,), 0, num_nodes, jnp.int32)
    extra_dst = (extra_src * 7 + 3) % num_nodes
    src = jnp.concatenate([ring_src, ring_dst, extra_src])
    dst = jnp.concatenate([ring_dst, ring_src, extra_dst])
    return jnp.stack([src, dst], axis=0)


def glorot(key, shape):
    fan_in, fan_out = shape
    limit = jnp.sqrt(6.0 / (fan_in + fan_out))
    return jax.random.uniform(key, shape, jnp.float32, -limit, limit)


def make_params(key, in_dim, out_dim):
    k_w, k_wd, k_b, k_bd, k_g, k_be = jax.random.split(key, 6)
    w = glorot(k_w, (in_dim, out_dim))                                # GCN conv weight
    b = 0.1 * jax.random.normal(k_b, (1, out_dim), jnp.float32)       # GCN bias (cancelled by BN)
    wd = glorot(k_wd, (in_dim, out_dim))                              # residual downsampling weight
    bd = 0.1 * jax.random.normal(k_bd, (1, out_dim), jnp.float32)     # residual downsampling bias
    gamma = 1.0 + 0.1 * jax.random.normal(k_g, (1, out_dim), jnp.float32)
    beta = 0.1 * jax.random.normal(k_be, (1, out_dim), jnp.float32)
    return w, b, wd, bd, gamma, beta


def reference_forward(x, a_hat, w, b, wd, bd, gamma, beta):
    h = a_hat @ (x @ w) + b
    mean = jnp.mean(h, axis=0, keepdims=True)
    var = jnp.mean((h - mean) ** 2, axis=0, keepdims=True)
    h = (h - mean) / jnp.sqrt(var + EPS) * gamma + beta
    h = jnp.maximum(h, 0.0)
    return h + x @ wd + bd


if __name__ == "__main__":
    key = jax.random.PRNGKey(0)
    k_x1, k_e1, k_p1, k_x2, k_e2, k_p2 = jax.random.split(key, 6)

    # ---- case 1: small graph -> fused single-kernel fast path ----
    n1, din1, dout1 = 64, 32, 16
    x1 = jax.random.normal(k_x1, (n1, din1), jnp.float32)
    a1 = build_normalized_adjacency(make_graph(k_e1, n1, 32), n1)
    w1, b1, wd1, bd1, g1, be1 = make_params(k_p1, din1, dout1)
    ref1 = reference_forward(x1, a1, w1, b1, wd1, bd1, g1, be1)

    out1 = gnn_block_forward(x1, a1, w1, b1, wd1, bd1, g1, be1, compute_dtype=jnp.float32)
    out1 = jax.block_until_ready(out1)
    assert out1.shape == (n1, dout1)
    assert jnp.allclose(out1, ref1, atol=2e-4, rtol=2e-4), "fused f32 kernel mismatch"

    # bf16 MXU operands on the fused path (f32 accumulation + f32 elementwise).
    out1_bf16 = gnn_block_forward(x1, a1, w1, b1, wd1, bd1, g1, be1, compute_dtype=jnp.bfloat16)
    out1_bf16 = jax.block_until_ready(out1_bf16)
    assert jnp.allclose(out1_bf16, ref1, atol=2e-1, rtol=2e-1), "fused bf16 kernel mismatch"

    # ---- case 2: larger / ragged graph, forced through the multi-tile path ----
    n2, din2, dout2 = 330, 48, 20              # pads to 384 nodes -> grid (3, 3) in stage 2
    x2 = jax.random.normal(k_x2, (n2, din2), jnp.float32)
    a2 = build_normalized_adjacency(make_graph(k_e2, n2, 128), n2)
    w2, b2, wd2, bd2, g2, be2 = make_params(k_p2, din2, dout2)
    ref2 = reference_forward(x2, a2, w2, b2, wd2, bd2, g2, be2)

    out2 = gnn_block_forward(x2, a2, w2, b2, wd2, bd2, g2, be2,
                             compute_dtype=jnp.float32, force_multi_tile=True)
    out2 = jax.block_until_ready(out2)
    assert out2.shape == (n2, dout2)
    assert jnp.allclose(out2, ref2, atol=5e-4, rtol=5e-4), "multi-tile f32 kernel mismatch"

    print("KERNEL_OK")
</pallas_src>

<mosaic_0001>
module attributes {stable_mosaic.version = 11 : i64} {
  func.func @fused_kernel(%arg0: memref<128x128xf32, #tpu.memory_space<vmem>>, %arg1: memref<128x128xf32, #tpu.memory_space<vmem>>, %arg2: memref<128x256xf32, #tpu.memory_space<vmem>>, %arg3: memref<3x128xf32, #tpu.memory_space<vmem>>, %arg4: memref<128x128xf32, #tpu.memory_space<vmem>>) attributes {dimension_semantics = [], scalar_prefetch = 0 : i64, scratch_operands = 0 : i64, tpu.core_type = #tpu.core_type<tc>} {
    %c0 = arith.constant 0 : index
    %c0_0 = arith.constant 0 : index
    %0 = vector.load %arg0[%c0, %c0_0] : memref<128x128xf32, #tpu.memory_space<vmem>>, vector<128x128xf32>
    %c0_1 = arith.constant 0 : index
    %c0_2 = arith.constant 0 : index
    %1 = vector.load %arg2[%c0_1, %c0_2] : memref<128x256xf32, #tpu.memory_space<vmem>>, vector<128x256xf32>
    %cst = arith.constant dense<0.000000e+00> : vector<128x256xf32>
    %2 = tpu.matmul %0, %1, %cst {dimension_numbers = #tpu.dot_dimension_numbers<[1], [0], [0], [1], [0, 0, 1, 1], [], []>} : vector<128x128xf32>, vector<128x256xf32>, vector<128x256xf32> -> vector<128x256xf32>
    %3 = vector.extract_strided_slice %2 {offsets = [0, 0], sizes = [128, 128], strides = [1, 1]} : vector<128x256xf32> to vector<128x128xf32>
    %4 = vector.extract_strided_slice %2 {offsets = [0, 128], sizes = [128, 128], strides = [1, 1]} : vector<128x256xf32> to vector<128x128xf32>
    %c0_3 = arith.constant 0 : index
    %c0_4 = arith.constant 0 : index
    %5 = vector.load %arg1[%c0_3, %c0_4] : memref<128x128xf32, #tpu.memory_space<vmem>>, vector<128x128xf32>
    %cst_5 = arith.constant dense<0.000000e+00> : vector<128x128xf32>
    %6 = tpu.matmul %5, %3, %cst_5 {dimension_numbers = #tpu.dot_dimension_numbers<[1], [0], [0], [1], [0, 0, 1, 1], [], []>} : vector<128x128xf32>, vector<128x128xf32>, vector<128x128xf32> -> vector<128x128xf32>
    %cst_6 = arith.constant dense<0.000000e+00> : vector<128xf32>
    %7 = vector.multi_reduction <add>, %6, %cst_6 [0] : vector<128x128xf32> to vector<128xf32>
    %8 = vector.shape_cast %7 : vector<128xf32> to vector<1x128xf32>
    %cst_7 = arith.constant 1.562500e-02 : f32
    %9 = vector.broadcast %cst_7 : f32 to vector<1x128xf32>
    %10 = arith.mulf %8, %9 : vector<1x128xf32>
    %11 = tpu.iota {dimensions = array<i32: 0>} : vector<128x128xi32>
    %c64_i32 = arith.constant 64 : i32
    %12 = vector.broadcast %c64_i32 : i32 to vector<128x128xi32>
    %13 = arith.cmpi slt, %11, %12 : vector<128x128xi32>
    %14 = vector.broadcast %10 : vector<1x128xf32> to vector<128x128xf32>
    %15 = arith.subf %6, %14 : vector<128x128xf32>
    %cst_8 = arith.constant 0.000000e+00 : f32
    %16 = vector.broadcast %cst_8 : f32 to vector<128x128xf32>
    %17 = arith.select %13, %15, %16 : vector<128x128xi1>, vector<128x128xf32>
    %18 = arith.mulf %17, %17 : vector<128x128xf32>
    %cst_9 = arith.constant dense<0.000000e+00> : vector<128xf32>
    %19 = vector.multi_reduction <add>, %18, %cst_9 [0] : vector<128x128xf32> to vector<128xf32>
    %20 = vector.shape_cast %19 : vector<128xf32> to vector<1x128xf32>
    %cst_10 = arith.constant 1.562500e-02 : f32
    %21 = vector.broadcast %cst_10 : f32 to vector<1x128xf32>
    %22 = arith.mulf %20, %21 : vector<1x128xf32>
    %c0_11 = arith.constant 0 : index
    %c0_12 = arith.constant 0 : index
    %23 = vector.load %arg3[%c0_11, %c0_12] : memref<3x128xf32, #tpu.memory_space<vmem>>, vector<1x128xf32>
    %c1 = arith.constant 1 : index
    %c0_13 = arith.constant 0 : index
    %24 = vector.load %arg3[%c1, %c0_13] : memref<3x128xf32, #tpu.memory_space<vmem>>, vector<1x128xf32>
    %c2 = arith.constant 2 : index
    %c0_14 = arith.constant 0 : index
    %25 = vector.load %arg3[%c2, %c0_14] : memref<3x128xf32, #tpu.memory_space<vmem>>, vector<1x128xf32>
    %cst_15 = arith.constant 9.99999974E-6 : f32
    %26 = vector.broadcast %cst_15 : f32 to vector<1x128xf32>
    %27 = arith.addf %22, %26 : vector<1x128xf32>
    %28 = math.rsqrt %27 : vector<1x128xf32>
    %29 = arith.mulf %23, %28 : vector<1x128xf32>
    %30 = arith.mulf %10, %29 : vector<1x128xf32>
    %31 = arith.subf %24, %30 : vector<1x128xf32>
    %32 = vector.broadcast %29 : vector<1x128xf32> to vector<128x128xf32>
    %33 = arith.mulf %6, %32 : vector<128x128xf32>
    %34 = vector.broadcast %31 : vector<1x128xf32> to vector<128x128xf32>
    %35 = arith.addf %33, %34 : vector<128x128xf32>
    %cst_16 = arith.constant 0.000000e+00 : f32
    %36 = vector.broadcast %cst_16 : f32 to vector<128x128xf32>
    %37 = arith.maximumf %35, %36 : vector<128x128xf32>
    %38 = arith.addf %37, %4 : vector<128x128xf32>
    %39 = vector.broadcast %25 : vector<1x128xf32> to vector<128x128xf32>
    %40 = arith.addf %38, %39 : vector<128x128xf32>
    %c0_17 = arith.constant 0 : index
    %c0_18 = arith.constant 0 : index
    %41 = vector.load %arg4[%c0_17, %c0_18] : memref<128x128xf32, #tpu.memory_space<vmem>>, vector<128x128xf32>
    tpu.vector_store %arg4[%c0_17, %c0_18], %40 {strides = array<i32>} : memref<128x128xf32, #tpu.memory_space<vmem>>, vector<128x128xf32>,
    return
  }
}

</mosaic_0001>

<llo_original>
// kernel: tpu_custom_call.1
$region0: #{tpu_custom_call.1}
  #allocation0 [shape = 'u32[]', space=smem, size = 0x4, offset = 0x4, fixed_abs, tag = 'smem constant byte address 0x4 - core index']
  #allocation1 [shape = 'u32[144,128]{1,0:T(1,128)}', space=vmem, size = 0x12000, scoped, tag = 'internal scratch']
  %s0 = inlined_call_operand.hbm [shape: f32[128,128], index: 0, kind: input, shape index: {}]
  %s1 = inlined_call_operand.hbm [shape: f32[128,128], index: 1, kind: input, shape index: {}]
  %s2 = inlined_call_operand.hbm [shape: f32[128,256], index: 2, kind: input, shape index: {}]
  %s3 = inlined_call_operand.vmem [shape: f32[3,128], index: 3, kind: input, shape index: {}]
  %s4 = inlined_call_operand.hbm [shape: f32[128,128], index: 4, kind: output, shape index: {}]
  %s5 = sld [smem:[#allocation0]]
  $region38: #{tpu_custom_call.1} parent=0
    _
  %s7 = ssub.s32 1, %s5
  %s8 = scalar_select 0, %s7, %s5
  $region1: #{tpu_custom_call.1} parent=0
    #allocation2 [shape = 'u8[65536]{0}', space=vmem, size = 0x10000, scoped, tag = 'input window, operand 0, single buffered']
    #allocation3 [shape = 's32[1]{0}', space=sflag, size = 0x4, scoped, tag = 'scoped memory for tpu_custom_call.1']
    #allocation4 [shape = 's32[1]{0}', space=sflag, size = 0x4, scoped, tag = 'scoped memory for tpu_custom_call.1']
    #allocation5 [shape = 'u8[65536]{0}', space=vmem, size = 0x10000, scoped, tag = 'input window, operand 1, single buffered']
    #allocation6 [shape = 's32[1]{0}', space=sflag, size = 0x4, scoped, tag = 'scoped memory for tpu_custom_call.1']
    #allocation7 [shape = 'u8[131072]{0}', space=vmem, size = 0x20000, scoped, tag = 'input window, operand 2, single buffered']
    #allocation8 [shape = 'u8[65536]{0}', space=vmem, size = 0x10000, scoped, tag = 'output window, operand 0, single buffered']
    %9 = vsyncpa [#allocation3], 0
    %10 = vsyncpa [#allocation6], 0
    %11 = vsyncpa [#allocation4], 0
    // Predicated region
    $region2: #{tpu_custom_call.1} parent=1 // pred_check
      _
    $region3: #{tpu_custom_call.1} parent=1 // pred_check_branch
      %13 = sbr.rel (0) target = $region5
    $region4: #{tpu_custom_call.1} parent=1 // pred_region
      %s15 = ssub.s32 2048, 2048
      %16 = vsyncadd [#allocation3], %s15
      %s17 = sshll.u32 [#allocation2], 4
      %s18 = int_to_ptr.vmem [resolvable:$true] %s17
      %23 = dma.hbm_to_vmem [thread:$0]  %s0, 2048, %s18, [#allocation3], 128, 128, 8
    $region5: #{tpu_custom_call.1} parent=1 // pred_fallthru
      _
    // Predicated region
    $region6: #{tpu_custom_call.1} parent=1 // pred_check
      _
    $region7: #{tpu_custom_call.1} parent=1 // pred_check_branch
      %25 = sbr.rel (0) target = $region9
    $region8: #{tpu_custom_call.1} parent=1 // pred_region
      %s27 = ssub.s32 2048, 2048
      %28 = vsyncadd [#allocation6], %s27
      %s29 = sshll.u32 [#allocation5], 4
      %s30 = int_to_ptr.vmem [resolvable:$true] %s29
      %35 = dma.hbm_to_vmem [thread:$0]  %s1, 2048, %s30, [#allocation6], 128, 128, 8
    $region9: #{tpu_custom_call.1} parent=1 // pred_fallthru
      _
    // Predicated region
    $region10: #{tpu_custom_call.1} parent=1 // pred_check
      _
    $region11: #{tpu_custom_call.1} parent=1 // pred_check_branch
      %37 = sbr.rel (0) target = $region13
    $region12: #{tpu_custom_call.1} parent=1 // pred_region
      %s39 = ssub.s32 4096, 4096
      %40 = vsyncadd [#allocation6], %s39
      %s41 = sshll.u32 [#allocation7], 4
      %s42 = int_to_ptr.vmem [resolvable:$true] %s41
      %47 = dma.hbm_to_vmem [thread:$0]  %s2, 4096, %s42, [#allocation6], 256, 256, 16
    $region13: #{tpu_custom_call.1} parent=1 // pred_fallthru
      _
    // Predicated region
    $region14: #{tpu_custom_call.1} parent=1 // pred_check
      _
    $region15: #{tpu_custom_call.1} parent=1 // pred_check_branch
      %49 = sbr.rel (0) target = $region17
    $region16: #{tpu_custom_call.1} parent=1 // pred_region
      _
    $region17: #{tpu_custom_call.1} parent=1 // pred_fallthru
      _
    // Predicated region
    $region18: #{tpu_custom_call.1} parent=1 // pred_check
      _
    $region19: #{tpu_custom_call.1} parent=1 // pred_check_branch
      %51 = sbr.rel (0) target = $region21
    $region20: #{tpu_custom_call.1} parent=1 // pred_region
      %52 = dma.done [#allocation3], 2048
    $region21: #{tpu_custom_call.1} parent=1 // pred_fallthru
      _
    // Predicated region
    $region22: #{tpu_custom_call.1} parent=1 // pred_check
      _
    $region23: #{tpu_custom_call.1} parent=1 // pred_check_branch
      %54 = sbr.rel (0) target = $region25
    $region24: #{tpu_custom_call.1} parent=1 // pred_region
      %55 = dma.done [#allocation6], 2048
    $region25: #{tpu_custom_call.1} parent=1 // pred_fallthru
      _
    // Predicated region
    $region26: #{tpu_custom_call.1} parent=1 // pred_check
      _
    $region27: #{tpu_custom_call.1} parent=1 // pred_check_branch
      %57 = sbr.rel (0) target = $region29
    $region28: #{tpu_custom_call.1} parent=1 // pred_region
      %58 = dma.done [#allocation6], 4096
    $region29: #{tpu_custom_call.1} parent=1 // pred_fallthru
      _
    %v59 = vld [vmem:[#allocation2] sm:$0xff]
    %v60 = vld [vmem:[#allocation2 + $0x8] sm:$0xff]
    %v61 = vld [vmem:[#allocation2 + $0x10] sm:$0xff]
    %v62 = vld [vmem:[#allocation2 + $0x18] sm:$0xff]
    %v63 = vld [vmem:[#allocation2 + $0x20] sm:$0xff]
    %v64 = vld [vmem:[#allocation2 + $0x28] sm:$0xff]
    %v65 = vld [vmem:[#allocation2 + $0x30] sm:$0xff]
    %v66 = vld [vmem:[#allocation2 + $0x38] sm:$0xff]
    %v67 = vld [vmem:[#allocation2 + $0x40] sm:$0xff]
    %v68 = vld [vmem:[#allocation2 + $0x48] sm:$0xff]
    %v69 = vld [vmem:[#allocation2 + $0x50] sm:$0xff]
    %v70 = vld [vmem:[#allocation2 + $0x58] sm:$0xff]
    %v71 = vld [vmem:[#allocation2 + $0x60] sm:$0xff]
    %v72 = vld [vmem:[#allocation2 + $0x68] sm:$0xff]
    %v73 = vld [vmem:[#allocation2 + $0x70] sm:$0xff]
    %v74 = vld [vmem:[#allocation2 + $0x78] sm:$0xff]
    %v75 = vld [vmem:[#allocation7] sm:$0xff]
    %v76 = vld [vmem:[#allocation7 + $0x8] sm:$0xff]
    %v77 = vld [vmem:[#allocation7 + $0x10] sm:$0xff]
    %v78 = vld [vmem:[#allocation7 + $0x18] sm:$0xff]
    %v79 = vld [vmem:[#allocation7 + $0x20] sm:$0xff]
    %v80 = vld [vmem:[#allocation7 + $0x28] sm:$0xff]
    %v81 = vld [vmem:[#allocation7 + $0x30] sm:$0xff]
    %v82 = vld [vmem:[#allocation7 + $0x38] sm:$0xff]
    %v83 = vld [vmem:[#allocation7 + $0x40] sm:$0xff]
    %v84 = vld [vmem:[#allocation7 + $0x48] sm:$0xff]
    %v85 = vld [vmem:[#allocation7 + $0x50] sm:$0xff]
    %v86 = vld [vmem:[#allocation7 + $0x58] sm:$0xff]
    %v87 = vld [vmem:[#allocation7 + $0x60] sm:$0xff]
    %v88 = vld [vmem:[#allocation7 + $0x68] sm:$0xff]
    %v89 = vld [vmem:[#allocation7 + $0x70] sm:$0xff]
    %v90 = vld [vmem:[#allocation7 + $0x78] sm:$0xff]
    %v91 = vld [vmem:[#allocation7 + $0x80] sm:$0xff]
    %v92 = vld [vmem:[#allocation7 + $0x88] sm:$0xff]
    %v93 = vld [vmem:[#allocation7 + $0x90] sm:$0xff]
    %v94 = vld [vmem:[#allocation7 + $0x98] sm:$0xff]
    %v95 = vld [vmem:[#allocation7 + $0xa0] sm:$0xff]
    %v96 = vld [vmem:[#allocation7 + $0xa8] sm:$0xff]
    %v97 = vld [vmem:[#allocation7 + $0xb0] sm:$0xff]
    %v98 = vld [vmem:[#allocation7 + $0xb8] sm:$0xff]
    %v99 = vld [vmem:[#allocation7 + $0xc0] sm:$0xff]
    %v100 = vld [vmem:[#allocation7 + $0xc8] sm:$0xff]
    %v101 = vld [vmem:[#allocation7 + $0xd0] sm:$0xff]
    %v102 = vld [vmem:[#allocation7 + $0xd8] sm:$0xff]
    %v103 = vld [vmem:[#allocation7 + $0xe0] sm:$0xff]
    %v104 = vld [vmem:[#allocation7 + $0xe8] sm:$0xff]
    %v105 = vld [vmem:[#allocation7 + $0xf0] sm:$0xff]
    %v106 = vld [vmem:[#allocation7 + $0xf8] sm:$0xff]
    %107 = vmatprep.subr.mxu0 %v106
    %108 = vmatpush1.msra.mxu0 %v105
    %109 = vmatprep.subr.mxu0 %v104
    %110 = vmatpush1.msra.mxu0 %v103
    %111 = vmatprep.subr.mxu0 %v102
    %112 = vmatpush1.msra.mxu0 %v101
    %113 = vmatprep.subr.mxu0 %v100
    %114 = vmatpush1.msra.mxu0 %v99
    %115 = vmatprep.subr.mxu0 %v98
    %116 = vmatpush1.msra.mxu0 %v97
    %117 = vmatprep.subr.mxu0 %v96
    %118 = vmatpush1.msra.mxu0 %v95
    %119 = vmatprep.subr.mxu0 %v94
    %120 = vmatpush1.msra.mxu0 %v93
    %121 = vmatprep.subr.mxu0 %v92
    %122 = vmatpush1.msra.mxu0 %v91
    %123 = vmatprep.subr.mxu0 %v90
    %124 = vmatpush1.msra.mxu0 %v89
    %125 = vmatprep.subr.mxu0 %v88
    %126 = vmatpush1.msra.mxu0 %v87
    %127 = vmatprep.subr.mxu0 %v86
    %128 = vmatpush1.msra.mxu0 %v85
    %129 = vmatprep.subr.mxu0 %v84
    %130 = vmatpush1.msra.mxu0 %v83
    %131 = vmatprep.subr.mxu0 %v82
    %132 = vmatpush1.msra.mxu0 %v81
    %133 = vmatprep.subr.mxu0 %v80
    %134 = vmatpush1.msra.mxu0 %v79
    %135 = vmatprep.subr.mxu0 %v78
    %136 = vmatpush1.msra.mxu0 %v77
    %137 = vmatprep.subr.mxu0 %v76
    %138 = vmatpush1.msra.mxu0 %v75
    %139 = vmatprep.subr.mxu0 0.0
    %140 = vmatpush2.msra.mxu0 0.0
    %141 = vmatprep.subr.mxu0 0.0
    %142 = vmatpush2.msra.mxu0 0.0
    %143 = vmatprep.subr.mxu0 0.0
    %144 = vmatpush2.msra.mxu0 0.0
    %145 = vmatprep.subr.mxu0 0.0
    %146 = vmatpush2.msra.mxu0 0.0
    %147 = vmatprep.subr.mxu0 0.0
    %148 = vmatpush2.msra.mxu0 0.0
    %149 = vmatprep.subr.mxu0 0.0
    %150 = vmatpush2.msra.mxu0 0.0
    %151 = vmatprep.subr.mxu0 0.0
    %152 = vmatpush2.msra.mxu0 0.0
    %153 = vmatprep.subr.mxu0 0.0
    %154 = vmatpush2.msra.mxu0 0.0
    %155 = vmatprep.subr.mxu0 0.0
    %156 = vmatpush2.msra.mxu0 0.0
    %157 = vmatprep.subr.mxu0 0.0
    %158 = vmatpush2.msra.mxu0 0.0
    %159 = vmatprep.subr.mxu0 0.0
    %160 = vmatpush2.msra.mxu0 0.0
    %161 = vmatprep.subr.mxu0 0.0
    %162 = vmatpush2.msra.mxu0 0.0
    %163 = vmatprep.subr.mxu0 0.0
    %164 = vmatpush2.msra.mxu0 0.0
    %165 = vmatprep.subr.mxu0 0.0
    %166 = vmatpush2.msra.mxu0 0.0
    %167 = vmatprep.subr.mxu0 0.0
    %168 = vmatpush2.msra.mxu0 0.0
    %169 = vmatprep.subr.mxu0 0.0
    %170 = vmatpush2.msra.mxu0 0.0
    %171 = vmatprep.mubr.f32.mxu0 0.0
    %172 = vmatmul.mubr.f32.gmra.mxu0 %v59
    %v173 = vpop.f32.mrf.mxu0
    %v174 = vadd.f32 0.0, %v173
    %v175 = vpop.f32.mrf.mxu0
    %v176 = vadd.f32 0.0, %v175
    %177 = vmatprep.mubr.f32.mxu0 0.0
    %178 = vmatmul.mubr.f32.gmra.mxu0 %v60
    %v179 = vpop.f32.mrf.mxu0
    %v180 = vadd.f32 0.0, %v179
    %v181 = vpop.f32.mrf.mxu0
    %v182 = vadd.f32 0.0, %v181
    %183 = vmatprep.mubr.f32.mxu0 0.0
    %184 = vmatmul.mubr.f32.gmra.mxu0 %v61
    %v185 = vpop.f32.mrf.mxu0
    %v186 = vadd.f32 0.0, %v185
    %v187 = vpop.f32.mrf.mxu0
    %v188 = vadd.f32 0.0, %v187
    %189 = vmatprep.mubr.f32.mxu0 0.0
    %190 = vmatmul.mubr.f32.gmra.mxu0 %v62
    %v191 = vpop.f32.mrf.mxu0
    %v192 = vadd.f32 0.0, %v191
    %v193 = vpop.f32.mrf.mxu0
    %v194 = vadd.f32 0.0, %v193
    %195 = vmatprep.mubr.f32.mxu0 0.0
    %196 = vmatmul.mubr.f32.gmra.mxu0 %v63
    %v197 = vpop.f32.mrf.mxu0
    %v198 = vadd.f32 0.0, %v197
    %v199 = vpop.f32.mrf.mxu0
    %v200 = vadd.f32 0.0, %v199
    %201 = vmatprep.mubr.f32.mxu0 0.0
    %202 = vmatmul.mubr.f32.gmra.mxu0 %v64
    %v203 = vpop.f32.mrf.mxu0
    %v204 = vadd.f32 0.0, %v203
    %v205 = vpop.f32.mrf.mxu0
    %v206 = vadd.f32 0.0, %v205
    %207 = vmatprep.mubr.f32.mxu0 0.0
    %208 = vmatmul.mubr.f32.gmra.mxu0 %v65
    %v209 = vpop.f32.mrf.mxu0
    %v210 = vadd.f32 0.0, %v209
    %v211 = vpop.f32.mrf.mxu0
    %v212 = vadd.f32 0.0, %v211
    %213 = vmatprep.mubr.f32.mxu0 0.0
    %214 = vmatmul.mubr.f32.gmra.mxu0 %v66
    %v215 = vpop.f32.mrf.mxu0
    %v216 = vadd.f32 0.0, %v215
    %v217 = vpop.f32.mrf.mxu0
    %v218 = vadd.f32 0.0, %v217
    %219 = vmatprep.mubr.f32.mxu0 0.0
    %220 = vmatmul.mubr.f32.gmra.mxu0 %v67
    %v221 = vpop.f32.mrf.mxu0
    %v222 = vadd.f32 0.0, %v221
    %v223 = vpop.f32.mrf.mxu0
    %v224 = vadd.f32 0.0, %v223
    %225 = vmatprep.mubr.f32.mxu0 0.0
    %226 = vmatmul.mubr.f32.gmra.mxu0 %v68
    %v227 = vpop.f32.mrf.mxu0
    %v228 = vadd.f32 0.0, %v227
    %v229 = vpop.f32.mrf.mxu0
    %v230 = vadd.f32 0.0, %v229
    %231 = vmatprep.mubr.f32.mxu0 0.0
    %232 = vmatmul.mubr.f32.gmra.mxu0 %v69
    %v233 = vpop.f32.mrf.mxu0
    %v234 = vadd.f32 0.0, %v233
    %v235 = vpop.f32.mrf.mxu0
    %v236 = vadd.f32 0.0, %v235
    %237 = vmatprep.mubr.f32.mxu0 0.0
    %238 = vmatmul.mubr.f32.gmra.mxu0 %v70
    %v239 = vpop.f32.mrf.mxu0
    %v240 = vadd.f32 0.0, %v239
    %v241 = vpop.f32.mrf.mxu0
    %v242 = vadd.f32 0.0, %v241
    %243 = vmatprep.mubr.f32.mxu0 0.0
    %244 = vmatmul.mubr.f32.gmra.mxu0 %v71
    %v245 = vpop.f32.mrf.mxu0
    %v246 = vadd.f32 0.0, %v245
    %v247 = vpop.f32.mrf.mxu0
    %v248 = vadd.f32 0.0, %v247
    %249 = vmatprep.mubr.f32.mxu0 0.0
    %250 = vmatmul.mubr.f32.gmra.mxu0 %v72
    %v251 = vpop.f32.mrf.mxu0
    %v252 = vadd.f32 0.0, %v251
    %v253 = vpop.f32.mrf.mxu0
    %v254 = vadd.f32 0.0, %v253
    %255 = vmatprep.mubr.f32.mxu0 0.0
    %256 = vmatmul.mubr.f32.gmra.mxu0 %v73
    %v257 = vpop.f32.mrf.mxu0
    %v258 = vadd.f32 0.0, %v257
    %v259 = vpop.f32.mrf.mxu0
    %v260 = vadd.f32 0.0, %v259
    %261 = vmatprep.mubr.f32.mxu0 0.0
    %262 = vmatmul.mubr.f32.gmra.mxu0 %v74
    %v263 = vpop.f32.mrf.mxu0
    %v264 = vadd.f32 0.0, %v263
    %v265 = vpop.f32.mrf.mxu0
    %v266 = vadd.f32 0.0, %v265
    %267 = vdwg.mxu0
    %v268 = vld [vmem:[#allocation5] sm:$0xff]
    %v269 = vld [vmem:[#allocation5 + $0x8] sm:$0xff]
    %v270 = vld [vmem:[#allocation5 + $0x10] sm:$0xff]
    %v271 = vld [vmem:[#allocation5 + $0x18] sm:$0xff]
    %v272 = vld [vmem:[#allocation5 + $0x20] sm:$0xff]
    %v273 = vld [vmem:[#allocation5 + $0x28] sm:$0xff]
    %v274 = vld [vmem:[#allocation5 + $0x30] sm:$0xff]
    %v275 = vld [vmem:[#allocation5 + $0x38] sm:$0xff]
    %v276 = vld [vmem:[#allocation5 + $0x40] sm:$0xff]
    %v277 = vld [vmem:[#allocation5 + $0x48] sm:$0xff]
    %v278 = vld [vmem:[#allocation5 + $0x50] sm:$0xff]
    %v279 = vld [vmem:[#allocation5 + $0x58] sm:$0xff]
    %v280 = vld [vmem:[#allocation5 + $0x60] sm:$0xff]
    %v281 = vld [vmem:[#allocation5 + $0x68] sm:$0xff]
    %v282 = vld [vmem:[#allocation5 + $0x70] sm:$0xff]
    %v283 = vld [vmem:[#allocation5 + $0x78] sm:$0xff]
    %284 = vmatprep.subr.mxu0 0.0
    %285 = vmatpush1.msra.mxu0 %v264
    %286 = vmatprep.subr.mxu0 0.0
    %287 = vmatpush1.msra.mxu0 %v258
    %288 = vmatprep.subr.mxu0 0.0
    %289 = vmatpush1.msra.mxu0 %v252
    %290 = vmatprep.subr.mxu0 0.0
    %291 = vmatpush1.msra.mxu0 %v246
    %292 = vmatprep.subr.mxu0 0.0
    %293 = vmatpush1.msra.mxu0 %v240
    %294 = vmatprep.subr.mxu0 0.0
    %295 = vmatpush1.msra.mxu0 %v234
    %296 = vmatprep.subr.mxu0 0.0
    %297 = vmatpush1.msra.mxu0 %v228
    %298 = vmatprep.subr.mxu0 0.0
    %299 = vmatpush1.msra.mxu0 %v222
    %300 = vmatprep.subr.mxu0 0.0
    %301 = vmatpush1.msra.mxu0 %v216
    %302 = vmatprep.subr.mxu0 0.0
    %303 = vmatpush1.msra.mxu0 %v210
    %304 = vmatprep.subr.mxu0 0.0
    %305 = vmatpush1.msra.mxu0 %v204
    %306 = vmatprep.subr.mxu0 0.0
    %307 = vmatpush1.msra.mxu0 %v198
    %308 = vmatprep.subr.mxu0 0.0
    %309 = vmatpush1.msra.mxu0 %v192
    %310 = vmatprep.subr.mxu0 0.0
    %311 = vmatpush1.msra.mxu0 %v186
    %312 = vmatprep.subr.mxu0 0.0
    %313 = vmatpush1.msra.mxu0 %v180
    %314 = vmatprep.subr.mxu0 0.0
    %315 = vmatpush1.msra.mxu0 %v174
    %316 = vmatprep.subr.mxu0 0.0
    %317 = vmatpush2.msra.mxu0 0.0
    %318 = vmatprep.subr.mxu0 0.0
    %319 = vmatpush2.msra.mxu0 0.0
    %320 = vmatprep.subr.mxu0 0.0
    %321 = vmatpush2.msra.mxu0 0.0
    %322 = vmatprep.subr.mxu0 0.0
    %323 = vmatpush2.msra.mxu0 0.0
    %324 = vmatprep.subr.mxu0 0.0
    %325 = vmatpush2.msra.mxu0 0.0
    %326 = vmatprep.subr.mxu0 0.0
    %327 = vmatpush2.msra.mxu0 0.0
    %328 = vmatprep.subr.mxu0 0.0
    %329 = vmatpush2.msra.mxu0 0.0
    %330 = vmatprep.subr.mxu0 0.0
    %331 = vmatpush2.msra.mxu0 0.0
    %332 = vmatprep.subr.mxu0 0.0
    %333 = vmatpush2.msra.mxu0 0.0
    %334 = vmatprep.subr.mxu0 0.0
    %335 = vmatpush2.msra.mxu0 0.0
    %336 = vmatprep.subr.mxu0 0.0
    %337 = vmatpush2.msra.mxu0 0.0
    %338 = vmatprep.subr.mxu0 0.0
    %339 = vmatpush2.msra.mxu0 0.0
    %340 = vmatprep.subr.mxu0 0.0
    %341 = vmatpush2.msra.mxu0 0.0
    %342 = vmatprep.subr.mxu0 0.0
    %343 = vmatpush2.msra.mxu0 0.0
    %344 = vmatprep.subr.mxu0 0.0
    %345 = vmatpush2.msra.mxu0 0.0
    %346 = vmatprep.subr.mxu0 0.0
    %347 = vmatpush2.msra.mxu0 0.0
    %348 = vmatprep.mubr.f32.mxu0 0.0
    %349 = vmatmul.mubr.f32.gmra.mxu0 %v268
    %v350 = vpop.f32.mrf.mxu0
    %v351 = vadd.f32 0.0, %v350
    %v352 = vpop.f32.mrf.mxu0
    %353 = vmatprep.mubr.f32.mxu0 0.0
    %354 = vmatmul.mubr.f32.gmra.mxu0 %v269
    %v355 = vpop.f32.mrf.mxu0
    %v356 = vadd.f32 0.0, %v355
    %v357 = vpop.f32.mrf.mxu0
    %358 = vmatprep.mubr.f32.mxu0 0.0
    %359 = vmatmul.mubr.f32.gmra.mxu0 %v270
    %v360 = vpop.f32.mrf.mxu0
    %v361 = vadd.f32 0.0, %v360
    %v362 = vpop.f32.mrf.mxu0
    %363 = vmatprep.mubr.f32.mxu0 0.0
    %364 = vmatmul.mubr.f32.gmra.mxu0 %v271
    %v365 = vpop.f32.mrf.mxu0
    %v366 = vadd.f32 0.0, %v365
    %v367 = vpop.f32.mrf.mxu0
    %368 = vmatprep.mubr.f32.mxu0 0.0
    %369 = vmatmul.mubr.f32.gmra.mxu0 %v272
    %v370 = vpop.f32.mrf.mxu0
    %v371 = vadd.f32 0.0, %v370
    %v372 = vpop.f32.mrf.mxu0
    %373 = vmatprep.mubr.f32.mxu0 0.0
    %374 = vmatmul.mubr.f32.gmra.mxu0 %v273
    %v375 = vpop.f32.mrf.mxu0
    %v376 = vadd.f32 0.0, %v375
    %v377 = vpop.f32.mrf.mxu0
    %378 = vmatprep.mubr.f32.mxu0 0.0
    %379 = vmatmul.mubr.f32.gmra.mxu0 %v274
    %v380 = vpop.f32.mrf.mxu0
    %v381 = vadd.f32 0.0, %v380
    %v382 = vpop.f32.mrf.mxu0
    %383 = vmatprep.mubr.f32.mxu0 0.0
    %384 = vmatmul.mubr.f32.gmra.mxu0 %v275
    %v385 = vpop.f32.mrf.mxu0
    %v386 = vadd.f32 0.0, %v385
    %v387 = vpop.f32.mrf.mxu0
    %388 = vmatprep.mubr.f32.mxu0 0.0
    %389 = vmatmul.mubr.f32.gmra.mxu0 %v276
    %v390 = vpop.f32.mrf.mxu0
    %v391 = vadd.f32 0.0, %v390
    %v392 = vpop.f32.mrf.mxu0
    %393 = vmatprep.mubr.f32.mxu0 0.0
    %394 = vmatmul.mubr.f32.gmra.mxu0 %v277
    %v395 = vpop.f32.mrf.mxu0
    %v396 = vadd.f32 0.0, %v395
    %v397 = vpop.f32.mrf.mxu0
    %398 = vmatprep.mubr.f32.mxu0 0.0
    %399 = vmatmul.mubr.f32.gmra.mxu0 %v278
    %v400 = vpop.f32.mrf.mxu0
    %v401 = vadd.f32 0.0, %v400
    %v402 = vpop.f32.mrf.mxu0
    %403 = vmatprep.mubr.f32.mxu0 0.0
    %404 = vmatmul.mubr.f32.gmra.mxu0 %v279
    %v405 = vpop.f32.mrf.mxu0
    %v406 = vadd.f32 0.0, %v405
    %v407 = vpop.f32.mrf.mxu0
    %408 = vmatprep.mubr.f32.mxu0 0.0
    %409 = vmatmul.mubr.f32.gmra.mxu0 %v280
    %v410 = vpop.f32.mrf.mxu0
    %v411 = vadd.f32 0.0, %v410
    %v412 = vpop.f32.mrf.mxu0
    %413 = vmatprep.mubr.f32.mxu0 0.0
    %414 = vmatmul.mubr.f32.gmra.mxu0 %v281
    %v415 = vpop.f32.mrf.mxu0
    %v416 = vadd.f32 0.0, %v415
    %v417 = vpop.f32.mrf.mxu0
    %418 = vmatprep.mubr.f32.mxu0 0.0
    %419 = vmatmul.mubr.f32.gmra.mxu0 %v282
    %v420 = vpop.f32.mrf.mxu0
    %v421 = vadd.f32 0.0, %v420
    %v422 = vpop.f32.mrf.mxu0
    %423 = vmatprep.mubr.f32.mxu0 0.0
    %424 = vmatmul.mubr.f32.gmra.mxu0 %v283
    %v425 = vpop.f32.mrf.mxu0
    %v426 = vadd.f32 0.0, %v425
    %v427 = vpop.f32.mrf.mxu0
    %428 = vdwg.mxu0
    %v429 = vadd.f32 %v351, %v356
    %v430 = vadd.f32 %v429, %v361
    %v431 = vadd.f32 %v430, %v366
    %v432 = vadd.f32 %v431, %v371
    %v433 = vadd.f32 %v432, %v376
    %v434 = vadd.f32 %v433, %v381
    %v435 = vadd.f32 %v434, %v386
    %v436 = vadd.f32 %v435, %v391
    %v437 = vadd.f32 %v436, %v396
    %v438 = vadd.f32 %v437, %v401
    %v439 = vadd.f32 %v438, %v406
    %v440 = vadd.f32 %v439, %v411
    %v441 = vadd.f32 %v440, %v416
    %v442 = vadd.f32 %v441, %v421
    %v443 = vadd.f32 %v442, %v426
    %v444 = vrot.slane %v443, 4
    %v445 = vadd.f32 %v443, %v444
    %v446 = vrot.slane %v445, 2
    %v447 = vadd.f32 %v445, %v446
    %v448 = vrot.slane %v447, 1
    %v449 = vadd.f32 %v447, %v448
    %v450 = vmul.f32 %v449, 0.015625
    %v451 = vlaneseq
    %v452 = vshrl.u32 %v451, 7
    %v453 = vadd.s32 %v452, 8
    %v454 = vadd.s32 %v452, 16
    %v455 = vadd.s32 %v452, 24
    %v456 = vadd.s32 %v452, 32
    %v457 = vadd.s32 %v452, 40
    %v458 = vadd.s32 %v452, 48
    %v459 = vadd.s32 %v452, 56
    %v460 = vadd.s32 %v452, 64
    %v461 = vadd.s32 %v452, 72
    %v462 = vadd.s32 %v452, 80
    %v463 = vadd.s32 %v452, 88
    %v464 = vadd.s32 %v452, 96
    %v465 = vadd.s32 %v452, 104
    %v466 = vadd.s32 %v452, 112
    %v467 = vadd.s32 %v452, 120
    %vm468 = vcmp.lt.s32.totalorder %v452, 64
    %vm469 = vcmp.lt.s32.totalorder %v453, 64
    %vm470 = vcmp.lt.s32.totalorder %v454, 64
    %vm471 = vcmp.lt.s32.totalorder %v455, 64
    %vm472 = vcmp.lt.s32.totalorder %v456, 64
    %vm473 = vcmp.lt.s32.totalorder %v457, 64
    %vm474 = vcmp.lt.s32.totalorder %v458, 64
    %vm475 = vcmp.lt.s32.totalorder %v459, 64
    %vm476 = vcmp.lt.s32.totalorder %v460, 64
    %vm477 = vcmp.lt.s32.totalorder %v461, 64
    %vm478 = vcmp.lt.s32.totalorder %v462, 64
    %vm479 = vcmp.lt.s32.totalorder %v463, 64
    %vm480 = vcmp.lt.s32.totalorder %v464, 64
    %vm481 = vcmp.lt.s32.totalorder %v465, 64
    %vm482 = vcmp.lt.s32.totalorder %v466, 64
    %vm483 = vcmp.lt.s32.totalorder %v467, 64
    %v484 = vsub.f32 %v351, %v450
    %v485 = vsub.f32 %v356, %v450
    %v486 = vsub.f32 %v361, %v450
    %v487 = vsub.f32 %v366, %v450
    %v488 = vsub.f32 %v371, %v450
    %v489 = vsub.f32 %v376, %v450
    %v490 = vsub.f32 %v381, %v450
    %v491 = vsub.f32 %v386, %v450
    %v492 = vsub.f32 %v391, %v450
    %v493 = vsub.f32 %v396, %v450
    %v494 = vsub.f32 %v401, %v450
    %v495 = vsub.f32 %v406, %v450
    %v496 = vsub.f32 %v411, %v450
    %v497 = vsub.f32 %v416, %v450
    %v498 = vsub.f32 %v421, %v450
    %v499 = vsub.f32 %v426, %v450
    %v500 = vsel %vm468, %v484, 0.0
    %v501 = vsel %vm469, %v485, 0.0
    %v502 = vsel %vm470, %v486, 0.0
    %v503 = vsel %vm471, %v487, 0.0
    %v504 = vsel %vm472, %v488, 0.0
    %v505 = vsel %vm473, %v489, 0.0
    %v506 = vsel %vm474, %v490, 0.0
    %v507 = vsel %vm475, %v491, 0.0
    %v508 = vsel %vm476, %v492, 0.0
    %v509 = vsel %vm477, %v493, 0.0
    %v510 = vsel %vm478, %v494, 0.0
    %v511 = vsel %vm479, %v495, 0.0
    %v512 = vsel %vm480, %v496, 0.0
    %v513 = vsel %vm481, %v497, 0.0
    %v514 = vsel %vm482, %v498, 0.0
    %v515 = vsel %vm483, %v499, 0.0
    %v516 = vmul.f32 %v500, %v500
    %v517 = vmul.f32 %v501, %v501
    %v518 = vmul.f32 %v502, %v502
    %v519 = vmul.f32 %v503, %v503
    %v520 = vmul.f32 %v504, %v504
    %v521 = vmul.f32 %v505, %v505
    %v522 = vmul.f32 %v506, %v506
    %v523 = vmul.f32 %v507, %v507
    %v524 = vmul.f32 %v508, %v508
    %v525 = vmul.f32 %v509, %v509
    %v526 = vmul.f32 %v510, %v510
    %v527 = vmul.f32 %v511, %v511
    %v528 = vmul.f32 %v512, %v512
    %v529 = vmul.f32 %v513, %v513
    %v530 = vmul.f32 %v514, %v514
    %v531 = vmul.f32 %v515, %v515
    %v532 = vadd.f32 %v516, %v517
    %v533 = vadd.f32 %v532, %v518
    %v534 = vadd.f32 %v533, %v519
    %v535 = vadd.f32 %v534, %v520
    %v536 = vadd.f32 %v535, %v521
    %v537 = vadd.f32 %v536, %v522
    %v538 = vadd.f32 %v537, %v523
    %v539 = vadd.f32 %v538, %v524
    %v540 = vadd.f32 %v539, %v525
    %v541 = vadd.f32 %v540, %v526
    %v542 = vadd.f32 %v541, %v527
    %v543 = vadd.f32 %v542, %v528
    %v544 = vadd.f32 %v543, %v529
    %v545 = vadd.f32 %v544, %v530
    %v546 = vadd.f32 %v545, %v531
    %v547 = vrot.slane %v546, 4
    %v548 = vadd.f32 %v546, %v547
    %v549 = vrot.slane %v548, 2
    %v550 = vadd.f32 %v548, %v549
    %v551 = vrot.slane %v550, 1
    %v552 = vadd.f32 %v550, %v551
    %v553 = vmul.f32 %v552, 0.015625
    %v554 = vld [vmem:[%s3] sm:$0x1]
    %v555 = vld [vmem:[%s3 + $0x1] sm:$0x1]
    %v556 = vld [vmem:[%s3 + $0x2] sm:$0x1]
    %v557 = vadd.f32 %v553, 1e-05
    %v558 = vrsqrt.pop %v557
    %v559 = vmul.f32 %v554, %v558
    %v560 = vmul.f32 %v450, %v559
    %v561 = vsub.f32 %v555, %v560
    %v562 = vlaneseq
    %v563 = vshrl.u32 %v562, 7
    %v564 = vsub.s32 0, %v563
    %v565 = vrot.slane %v559, %v564
    %v566 = vmul.f32 %v351, %v565
    %v567 = vmul.f32 %v356, %v565
    %v568 = vmul.f32 %v361, %v565
    %v569 = vmul.f32 %v366, %v565
    %v570 = vmul.f32 %v371, %v565
    %v571 = vmul.f32 %v376, %v565
    %v572 = vmul.f32 %v381, %v565
    %v573 = vmul.f32 %v386, %v565
    %v574 = vmul.f32 %v391, %v565
    %v575 = vmul.f32 %v396, %v565
    %v576 = vmul.f32 %v401, %v565
    %v577 = vmul.f32 %v406, %v565
    %v578 = vmul.f32 %v411, %v565
    %v579 = vmul.f32 %v416, %v565
    %v580 = vmul.f32 %v421, %v565
    %v581 = vmul.f32 %v426, %v565
    %v582 = vlaneseq
    %v583 = vshrl.u32 %v582, 7
    %v584 = vsub.s32 0, %v583
    %v585 = vrot.slane %v561, %v584
    %v586 = vadd.f32 %v566, %v585
    %v587 = vadd.f32 %v567, %v585
    %v588 = vadd.f32 %v568, %v585
    %v589 = vadd.f32 %v569, %v585
    %v590 = vadd.f32 %v570, %v585
    %v591 = vadd.f32 %v571, %v585
    %v592 = vadd.f32 %v572, %v585
    %v593 = vadd.f32 %v573, %v585
    %v594 = vadd.f32 %v574, %v585
    %v595 = vadd.f32 %v575, %v585
    %v596 = vadd.f32 %v576, %v585
    %v597 = vadd.f32 %v577, %v585
    %v598 = vadd.f32 %v578, %v585
    %v599 = vadd.f32 %v579, %v585
    %v600 = vadd.f32 %v580, %v585
    %v601 = vadd.f32 %v581, %v585
    %v602 = vmax.f32 %v586, 0.0
    %v603 = vmax.f32 %v587, 0.0
    %v604 = vmax.f32 %v588, 0.0
    %v605 = vmax.f32 %v589, 0.0
    %v606 = vmax.f32 %v590, 0.0
    %v607 = vmax.f32 %v591, 0.0
    %v608 = vmax.f32 %v592, 0.0
    %v609 = vmax.f32 %v593, 0.0
    %v610 = vmax.f32 %v594, 0.0
    %v611 = vmax.f32 %v595, 0.0
    %v612 = vmax.f32 %v596, 0.0
    %v613 = vmax.f32 %v597, 0.0
    %v614 = vmax.f32 %v598, 0.0
    %v615 = vmax.f32 %v599, 0.0
    %v616 = vmax.f32 %v600, 0.0
    %v617 = vmax.f32 %v601, 0.0
    %v618 = vadd.f32 %v602, %v176
    %v619 = vadd.f32 %v603, %v182
    %v620 = vadd.f32 %v604, %v188
    %v621 = vadd.f32 %v605, %v194
    %v622 = vadd.f32 %v606, %v200
    %v623 = vadd.f32 %v607, %v206
    %v624 = vadd.f32 %v608, %v212
    %v625 = vadd.f32 %v609, %v218
    %v626 = vadd.f32 %v610, %v224
    %v627 = vadd.f32 %v611, %v230
    %v628 = vadd.f32 %v612, %v236
    %v629 = vadd.f32 %v613, %v242
    %v630 = vadd.f32 %v614, %v248
    %v631 = vadd.f32 %v615, %v254
    %v632 = vadd.f32 %v616, %v260
    %v633 = vadd.f32 %v617, %v266
    %v634 = vlaneseq
    %v635 = vshrl.u32 %v634, 7
    %v636 = vsub.s32 0, %v635
    %v637 = vrot.slane %v556, %v636
    %v638 = vadd.f32 %v618, %v637
    %v639 = vadd.f32 %v619, %v637
    %v640 = vadd.f32 %v620, %v637
    %v641 = vadd.f32 %v621, %v637
    %v642 = vadd.f32 %v622, %v637
    %v643 = vadd.f32 %v623, %v637
    %v644 = vadd.f32 %v624, %v637
    %v645 = vadd.f32 %v625, %v637
    %v646 = vadd.f32 %v626, %v637
    %v647 = vadd.f32 %v627, %v637
    %v648 = vadd.f32 %v628, %v637
    %v649 = vadd.f32 %v629, %v637
    %v650 = vadd.f32 %v630, %v637
    %v651 = vadd.f32 %v631, %v637
    %v652 = vadd.f32 %v632, %v637
    %v653 = vadd.f32 %v633, %v637
    %654 = vst [vmem:[#allocation8] sm:$0xff] %v638
    %655 = vst [vmem:[#allocation8 + $0x8] sm:$0xff] %v639
    %656 = vst [vmem:[#allocation8 + $0x10] sm:$0xff] %v640
    %657 = vst [vmem:[#allocation8 + $0x18] sm:$0xff] %v641
    %658 = vst [vmem:[#allocation8 + $0x20] sm:$0xff] %v642
    %659 = vst [vmem:[#allocation8 + $0x28] sm:$0xff] %v643
    %660 = vst [vmem:[#allocation8 + $0x30] sm:$0xff] %v644
    %661 = vst [vmem:[#allocation8 + $0x38] sm:$0xff] %v645
    %662 = vst [vmem:[#allocation8 + $0x40] sm:$0xff] %v646
    %663 = vst [vmem:[#allocation8 + $0x48] sm:$0xff] %v647
    %664 = vst [vmem:[#allocation8 + $0x50] sm:$0xff] %v648
    %665 = vst [vmem:[#allocation8 + $0x58] sm:$0xff] %v649
    %666 = vst [vmem:[#allocation8 + $0x60] sm:$0xff] %v650
    %667 = vst [vmem:[#allocation8 + $0x68] sm:$0xff] %v651
    %668 = vst [vmem:[#allocation8 + $0x70] sm:$0xff] %v652
    %669 = vst [vmem:[#allocation8 + $0x78] sm:$0xff] %v653
    // Predicated region
    $region30: #{tpu_custom_call.1} parent=1 // pred_check
      _
    $region31: #{tpu_custom_call.1} parent=1 // pred_check_branch
      %671 = sbr.rel (0) target = $region33
    $region32: #{tpu_custom_call.1} parent=1 // pred_region
      %s673 = ssub.s32 2048, 2048
      %674 = vsyncadd [#allocation4], %s673
      %s675 = sshll.u32 [#allocation8], 4
      %s676 = int_to_ptr.vmem [resolvable:$true] %s675
      %681 = dma.vmem_to_hbm [thread:$0]  %s676, 2048, %s4, [#allocation4], 128, 128, 8
    $region33: #{tpu_custom_call.1} parent=1 // pred_fallthru
      _
    // Predicated region
    $region34: #{tpu_custom_call.1} parent=1 // pred_check
      _
    $region35: #{tpu_custom_call.1} parent=1 // pred_check_branch
      %683 = sbr.rel (0) target = $region37
    $region36: #{tpu_custom_call.1} parent=1 // pred_region
      %684 = dma.done [#allocation4], 2048
    $region37: #{tpu_custom_call.1} parent=1 // pred_fallthru
      _
    %685 = vsyncpa [#allocation3], 1
    %686 = vsyncpa [#allocation6], 1
    %687 = vsyncpa [#allocation4], 1

</llo_original>
